<compile_context>
chip_gen: v6e
topology: v6e:2x2x1
jax: 0.10.0
libtpu: 0.0.40
codegen_flags: <defaults>
</compile_context>

<pallas_src>
import functools

import jax
import jax.numpy as jnp
from jax import lax
from jax.experimental import pallas as pl
from jax.experimental.pallas import tpu as pltpu


def _round_up(x, m):
    return ((x + m - 1) // m) * m


def _as_pair(v):
    return (v, v) if isinstance(v, int) else (int(v[0]), int(v[1]))


# ----------------------------- Pallas kernels --------------------------------
def _conv_bn_kernel_single_k(a_ref, w_ref, scale_ref, shift_ref, o_ref,
                             *, apply_relu):
    # Whole reduction resident: no accumulator scratch, MXU -> epilogue -> store.
    y = jnp.dot(a_ref[...], w_ref[...], preferred_element_type=jnp.float32)
    y = y * scale_ref[...] + shift_ref[...]          # folded BN, f32 epilogue
    if apply_relu:
        y = jnp.maximum(y, 0.0)
    o_ref[...] = y.astype(o_ref.dtype)


def _conv_bn_kernel_multi_k(a_ref, w_ref, scale_ref, shift_ref, o_ref, acc_ref,
                            *, apply_relu):
    # K is tiled: f32 accumulator resident across the (innermost) K grid axis.
    @pl.when(pl.program_id(1) == 0)
    def _init():
        acc_ref[...] = jnp.zeros_like(acc_ref)

    acc_ref[...] += jnp.dot(a_ref[...], w_ref[...],
                            preferred_element_type=jnp.float32)

    @pl.when(pl.program_id(1) == pl.num_programs(1) - 1)
    def _finalize():
        y = acc_ref[...] * scale_ref[...] + shift_ref[...]
        if apply_relu:
            y = jnp.maximum(y, 0.0)
        o_ref[...] = y.astype(o_ref.dtype)


def _pick_tile_m(M, target=512, min_steps=4):
    """Big tiles for DMA efficiency, but keep >=min_steps grid steps (2 TCs)."""
    tm = target
    while tm > 128 and pl.cdiv(M, tm) < min_steps:
        tm //= 2
    return int(min(tm, _round_up(M, 16)))


def _fused_conv_bn_matmul(a, w_mat, scale, shift, *, apply_relu,
                          tile_m=512, tile_k=512, max_resident_k=2048):
    """a: (M, K) bf16 patches, w_mat: (K, Cout) bf16, scale/shift: (1, Cout) f32."""
    M, K = a.shape
    Cout = w_mat.shape[1]

    # Lane-dense output: pad Cout up to a multiple of 128 (pad lives only on the
    # tiny weight/scale/shift tensors; padded lanes are sliced off afterwards).
    Cout_pad = _round_up(Cout, 128)

    # K handling: keep the whole reduction resident when it fits comfortably
    # (all C2FNet BasicConv2d layers: K <= 2048); otherwise tile K (only then is
    # the patch matrix padded along K so the reduction stays exact).
    if K <= max_resident_k:
        tk, K_pad = K, K            # full-dim block: legal even if K % 128 != 0
    else:
        tk = tile_k
        K_pad = _round_up(K, tk)
        a = jnp.pad(a, ((0, 0), (0, K_pad - K)))

    if (K_pad != K) or (Cout_pad != Cout):
        w_mat = jnp.pad(w_mat, ((0, K_pad - K), (0, Cout_pad - Cout)))
    if Cout_pad != Cout:
        scale = jnp.pad(scale, ((0, 0), (0, Cout_pad - Cout)))
        shift = jnp.pad(shift, ((0, 0), (0, Cout_pad - Cout)))

    tm = _pick_tile_m(M, tile_m)
    m_blocks = pl.cdiv(M, tm)           # boundary block handled by Pallas masking
    k_blocks = K_pad // tk
    grid = (m_blocks, k_blocks)
    single_k = (k_blocks == 1)

    kernel = functools.partial(
        _conv_bn_kernel_single_k if single_k else _conv_bn_kernel_multi_k,
        apply_relu=apply_relu)
    scratch = [] if single_k else [pltpu.VMEM((tm, Cout_pad), jnp.float32)]

    # VMEM budget: double-buffered a & w blocks + double-buffered f32 out block
    # (+ accumulator scratch when K is tiled) + headroom; clamped to [32, 64] MiB.
    block_bytes = (2 * tm * tk * 2            # patches (bf16), double-buffered
                   + 2 * tk * Cout_pad * 2    # weights (bf16), double-buffered
                   + 2 * tm * Cout_pad * 4    # output blocks (f32)
                   + (0 if single_k else tm * Cout_pad * 4)
                   + 4 * Cout_pad * 4)        # scale/shift
    vmem_limit = int(min(64 * 1024 * 1024, max(32 * 1024 * 1024, 2 * block_bytes)))

    cost = pl.CostEstimate(
        flops=2 * m_blocks * tm * K_pad * Cout_pad,
        transcendentals=0,
        bytes_accessed=int(M * K_pad * 2
                           + K_pad * Cout_pad * 2
                           + M * Cout_pad * 4))

    out = pl.pallas_call(
        kernel,
        out_shape=jax.ShapeDtypeStruct((M, Cout_pad), jnp.float32),
        grid_spec=pltpu.PrefetchScalarGridSpec(
            num_scalar_prefetch=0,
            grid=grid,
            in_specs=[
                # Streamed patches tile. (Sweep pipeline_mode=pl.Buffered(2..4)
                # on large shapes if DMA latency is exposed.)
                pl.BlockSpec((tm, tk), lambda i, k: (i, k)),
                pl.BlockSpec((tk, Cout_pad), lambda i, k: (k, 0)),   # weights
                pl.BlockSpec((1, Cout_pad), lambda i, k: (0, 0)),    # BN scale
                pl.BlockSpec((1, Cout_pad), lambda i, k: (0, 0)),    # BN shift
            ],
            out_specs=pl.BlockSpec((tm, Cout_pad), lambda i, k: (i, 0)),
            scratch_shapes=scratch,
        ),
        compiler_params=pltpu.CompilerParams(
            dimension_semantics=("parallel", "arbitrary"),
            vmem_limit_bytes=vmem_limit),
        cost_estimate=cost,
    )(a, w_mat, scale, shift)

    return out[:, :Cout] if Cout_pad != Cout else out


# ------------------------------ Module wrapper -------------------------------
def basic_conv2d(x, conv_weight, bn_gamma=None, bn_beta=None, bn_mean=None,
                 bn_var=None, *, stride=1, padding=0, dilation=1,
                 relu=False, bn=True, eps=1e-5):
    """Forward pass of BasicConv2d (Conv2d bias=False -> BN(eval) -> [ReLU]).

    x:           (N, Cin, H, W)      NCHW float32
    conv_weight: (Cout, Cin, KH, KW) float32
    bn_*:        (Cout,)             BatchNorm2d affine params / running stats
    Returns (N, Cout, OH, OW) NCHW float32.
    """
    N, Cin, H, W = x.shape
    Cout, Cin_w, KH, KW = conv_weight.shape
    assert Cin == Cin_w, (Cin, Cin_w)
    sh, sw = _as_pair(stride)
    ph, pw = _as_pair(padding)
    dh, dw = _as_pair(dilation)

    # NCHW -> NHWC once (input-sized), cast to bf16 so the im2col matrix (if
    # any) is produced directly in bf16 and needs no further transpose/cast.
    x_nhwc = jnp.transpose(x, (0, 2, 3, 1)).astype(jnp.bfloat16)

    pointwise = (KH == 1 and KW == 1 and (sh, sw) == (1, 1)
                 and (ph, pw) == (0, 0))
    if pointwise:
        # 1x1 conv: the NHWC activation *is* the patch matrix — no im2col pass.
        OH, OW = H, W
        K = Cin
        a = x_nhwc.reshape(N * H * W, Cin)
    else:
        # im2col in NHWC: (N, OH, OW, K), K = Cin*KH*KW with feature order
        # (Cin, KH, KW) — matches the (Cout, Cin, KH, KW) weight flatten below.
        patches = lax.conv_general_dilated_patches(
            x_nhwc, filter_shape=(KH, KW), window_strides=(sh, sw),
            padding=((ph, ph), (pw, pw)), rhs_dilation=(dh, dw),
            dimension_numbers=("NHWC", "HWIO", "NHWC"))
        _, OH, OW, K = patches.shape
        assert K == Cin * KH * KW, (K, Cin, KH, KW)
        a = patches.reshape(N * OH * OW, K)       # contiguous reshape (no copy)

    w_mat = conv_weight.reshape(Cout, Cin * KH * KW).T.astype(jnp.bfloat16)

    # Fold BatchNorm (inference semantics, running stats) into scale/shift.
    if bn:
        inv_std = 1.0 / jnp.sqrt(bn_var.astype(jnp.float32) + eps)
        scale = (bn_gamma * inv_std).reshape(1, Cout).astype(jnp.float32)
        shift = (bn_beta - bn_mean * bn_gamma * inv_std).reshape(1, Cout).astype(jnp.float32)
    else:
        scale = jnp.ones((1, Cout), jnp.float32)
        shift = jnp.zeros((1, Cout), jnp.float32)

    out_flat = _fused_conv_bn_matmul(a, w_mat, scale, shift, apply_relu=relu)

    # (N*OH*OW, Cout) -> NCHW (single output-sized transpose, fused with slice).
    return out_flat.reshape(N, OH, OW, Cout).transpose(0, 3, 1, 2)


# ------------------------------ Pure-JAX reference ---------------------------
def _reference(x, w, g, b, m, v, *, stride, padding, dilation, relu, bn, eps=1e-5):
    sh, sw = _as_pair(stride)
    ph, pw = _as_pair(padding)
    dh, dw = _as_pair(dilation)
    # bf16-quantized conv operands + f32 accumulation: apples-to-apples with
    # the bf16-operand / f32-accumulate MXU kernel.
    y = lax.conv_general_dilated(
        x.astype(jnp.bfloat16), w.astype(jnp.bfloat16),
        window_strides=(sh, sw), padding=((ph, ph), (pw, pw)),
        rhs_dilation=(dh, dw), dimension_numbers=("NCHW", "OIHW", "NCHW"),
        preferred_element_type=jnp.float32)
    if bn:
        inv = 1.0 / jnp.sqrt(v + eps)
        y = (y - m[None, :, None, None]) * inv[None, :, None, None]
        y = y * g[None, :, None, None] + b[None, :, None, None]
    if relu:
        y = jnp.maximum(y, 0.0)
    return y


# ---------------------------------- Main -------------------------------------
if __name__ == "__main__":
    key = jax.random.PRNGKey(0)

    def make_params(k, Cin, Cout, KH, KW):
        ks = jax.random.split(k, 5)
        w = jax.random.normal(ks[0], (Cout, Cin, KH, KW), jnp.float32) * 0.1
        g = 1.0 + 0.1 * jax.random.normal(ks[1], (Cout,), jnp.float32)
        b = 0.1 * jax.random.normal(ks[2], (Cout,), jnp.float32)
        m = 0.1 * jax.random.normal(ks[3], (Cout,), jnp.float32)
        v = jnp.abs(1.0 + 0.1 * jax.random.normal(ks[4], (Cout,), jnp.float32))
        return w, g, b, m, v

    # Small configs covering the BasicConv2d variants used inside C2FNet:
    # MSCA 1x1 reduction (pointwise fast path), 3x3 pad=1 relu (ACFM/DGCM/
    # upconv), rectangular (1,3) kernel and dilated 3x3 (RFB_modified, with a
    # non-tile-multiple spatial size), plus a strided / no-BN sanity case.
    configs = [
        dict(Cin=32, Cout=16, k=(1, 1), stride=1, padding=0,      dilation=1, relu=True,  bn=True,  H=16, W=16),
        dict(Cin=32, Cout=32, k=(3, 3), stride=1, padding=1,      dilation=1, relu=True,  bn=True,  H=16, W=16),
        dict(Cin=32, Cout=32, k=(1, 3), stride=1, padding=(0, 1), dilation=1, relu=False, bn=True,  H=16, W=16),
        dict(Cin=32, Cout=32, k=(3, 3), stride=1, padding=3,      dilation=3, relu=True,  bn=True,  H=15, W=15),
        dict(Cin=4,  Cout=8,  k=(3, 3), stride=2, padding=1,      dilation=1, relu=False, bn=False, H=16, W=16),
    ]

    N = 2
    for idx, cfg in enumerate(configs):
        key, kx, kp = jax.random.split(key, 3)
        x = jax.random.normal(kx, (N, cfg["Cin"], cfg["H"], cfg["W"]), jnp.float32)
        w, g, b, m, v = make_params(kp, cfg["Cin"], cfg["Cout"], *cfg["k"])

        out = basic_conv2d(x, w, g, b, m, v,
                           stride=cfg["stride"], padding=cfg["padding"],
                           dilation=cfg["dilation"], relu=cfg["relu"], bn=cfg["bn"])
        out = jax.block_until_ready(out)

        ref = _reference(x, w, g, b, m, v,
                         stride=cfg["stride"], padding=cfg["padding"],
                         dilation=cfg["dilation"], relu=cfg["relu"], bn=cfg["bn"])
        assert out.shape == ref.shape, (idx, out.shape, ref.shape)
        max_err = float(jnp.max(jnp.abs(out - ref)))
        assert jnp.allclose(out, ref, atol=1e-2, rtol=1e-2), (idx, max_err)

    print("KERNEL_OK")
</pallas_src>

<mosaic_0001>
module attributes {stable_mosaic.version = 11 : i64} {
  func.func @_conv_bn_kernel_single_k(%arg0: i32, %arg1: i32, %arg2: memref<128x32xbf16, #tpu.memory_space<vmem>>, %arg3: memref<32x128xbf16, #tpu.memory_space<vmem>>, %arg4: memref<1x128xf32, #tpu.memory_space<vmem>>, %arg5: memref<1x128xf32, #tpu.memory_space<vmem>>, %arg6: memref<128x128xf32, #tpu.memory_space<vmem>>) attributes {dimension_semantics = [#tpu.dimension_semantics<parallel>, #tpu.dimension_semantics<arbitrary>], iteration_bounds = array<i64: 4, 1>, scalar_prefetch = 0 : i64, scratch_operands = 0 : i64, tpu.core_type = #tpu.core_type<tc>, window_params = [{transform_indices = @transform_0, window_bounds = array<i64: 128, 32>}, {transform_indices = @transform_1, window_bounds = array<i64: 32, 128>}, {pipeline_mode = #tpu.pipeline_mode<synchronous>, transform_indices = @transform_2, window_bounds = array<i64: 1, 128>}, {pipeline_mode = #tpu.pipeline_mode<synchronous>, transform_indices = @transform_3, window_bounds = array<i64: 1, 128>}, {transform_indices = @transform_4, window_bounds = array<i64: 128, 128>}]} {
    %c0 = arith.constant 0 : index
    %c0_0 = arith.constant 0 : index
    %0 = vector.load %arg2[%c0, %c0_0] : memref<128x32xbf16, #tpu.memory_space<vmem>>, vector<128x32xbf16>
    %c0_1 = arith.constant 0 : index
    %c0_2 = arith.constant 0 : index
    %1 = vector.load %arg3[%c0_1, %c0_2] : memref<32x128xbf16, #tpu.memory_space<vmem>>, vector<32x128xbf16>
    %cst = arith.constant dense<0.000000e+00> : vector<128x128xf32>
    %2 = tpu.matmul %0, %1, %cst {dimension_numbers = #tpu.dot_dimension_numbers<[1], [0], [0], [1], [0, 0, 1, 1], [], []>} : vector<128x32xbf16>, vector<32x128xbf16>, vector<128x128xf32> -> vector<128x128xf32>
    %c0_3 = arith.constant 0 : index
    %c0_4 = arith.constant 0 : index
    %3 = vector.load %arg4[%c0_3, %c0_4] : memref<1x128xf32, #tpu.memory_space<vmem>>, vector<1x128xf32>
    %4 = vector.broadcast %3 : vector<1x128xf32> to vector<128x128xf32>
    %5 = arith.mulf %2, %4 : vector<128x128xf32>
    %c0_5 = arith.constant 0 : index
    %c0_6 = arith.constant 0 : index
    %6 = vector.load %arg5[%c0_5, %c0_6] : memref<1x128xf32, #tpu.memory_space<vmem>>, vector<1x128xf32>
    %7 = vector.broadcast %6 : vector<1x128xf32> to vector<128x128xf32>
    %8 = arith.addf %5, %7 : vector<128x128xf32>
    %cst_7 = arith.constant 0.000000e+00 : f32
    %9 = vector.broadcast %cst_7 : f32 to vector<128x128xf32>
    %10 = arith.maximumf %8, %9 : vector<128x128xf32>
    %c0_8 = arith.constant 0 : index
    %c0_9 = arith.constant 0 : index
    %11 = vector.load %arg6[%c0_8, %c0_9] : memref<128x128xf32, #tpu.memory_space<vmem>>, vector<128x128xf32>
    tpu.vector_store %arg6[%c0_8, %c0_9], %10 {strides = array<i32>} : memref<128x128xf32, #tpu.memory_space<vmem>>, vector<128x128xf32>,
    return
  }
  func.func @transform_0(%arg0: i32, %arg1: i32) -> (i32, i32) {
    %c0_i32 = arith.constant 0 : i32
    return %arg0, %arg1 : i32, i32
  }
  func.func @transform_1(%arg0: i32, %arg1: i32) -> (i32, i32) {
    %c0_i32 = arith.constant 0 : i32
    %c0_i32_0 = arith.constant 0 : i32
    return %arg1, %c0_i32 : i32, i32
  }
  func.func @transform_2(%arg0: i32, %arg1: i32) -> (i32, i32) {
    %c0_i32 = arith.constant 0 : i32
    %c0_i32_0 = arith.constant 0 : i32
    %c0_i32_1 = arith.constant 0 : i32
    return %c0_i32, %c0_i32_0 : i32, i32
  }
  func.func @transform_3(%arg0: i32, %arg1: i32) -> (i32, i32) {
    %c0_i32 = arith.constant 0 : i32
    %c0_i32_0 = arith.constant 0 : i32
    %c0_i32_1 = arith.constant 0 : i32
    return %c0_i32, %c0_i32_0 : i32, i32
  }
  func.func @transform_4(%arg0: i32, %arg1: i32) -> (i32, i32) {
    %c0_i32 = arith.constant 0 : i32
    %c0_i32_0 = arith.constant 0 : i32
    return %arg0, %c0_i32 : i32, i32
  }
}

</mosaic_0001>

<llo_original>
// kernel: tpu_custom_call.1
$region0: #{tpu_custom_call.1}
  #allocation0 [shape = 'u32[]', space=smem, size = 0x4, offset = 0x4, fixed_abs, tag = 'smem constant byte address 0x4 - core index']
  #allocation1 [shape = 'u32[144,128]{1,0:T(1,128)}', space=vmem, size = 0x12000, scoped, tag = 'internal scratch']
  %s0 = inlined_call_operand.vmem [shape: bf16[512,32], index: 0, kind: input, shape index: {}]
  %s1 = inlined_call_operand.vmem [shape: bf16[32,128], index: 1, kind: input, shape index: {}]
  %s2 = inlined_call_operand.vmem [shape: f32[1,128], index: 2, kind: input, shape index: {}]
  %s3 = inlined_call_operand.vmem [shape: f32[1,128], index: 3, kind: input, shape index: {}]
  %s4 = inlined_call_operand.hbm [shape: f32[512,128], index: 4, kind: output, shape index: {}]
  %s5 = sld [smem:[#allocation0]]
  $region49: #{tpu_custom_call.1} parent=0
    _
  %s7 = ssub.s32 1, %s5
  %s8 = scalar_select 0, %s7, %s5
  $region1: #{tpu_custom_call.1} parent=0
    #allocation2 [shape = 'u8[131072]{0}', space=vmem, size = 0x20000, scoped, tag = 'output window, operand 0']
    #allocation3 [shape = 's32[2]{0}', space=sflag, size = 0x8, scoped, tag = 'scoped memory for tpu_custom_call.1']
    %9 = vsyncpa [#allocation3], 0
    %s10 = scalar_lea.sflag [#allocation3], 1
    %11 = vsyncpa %s10, 0
    loop: start=0, step=1, limit=6
    $region2: #{tpu_custom_call.1} parent=1 // loop_pre_header
      _
    $region3: #{tpu_custom_call.1} parent=1 // loop_header
      %s13 = sphi 0, %s17
      %p14 = scmp.ge.s32.totalorder %s13, 6
      %s20 = sphi 0, %s32
      %s21 = sphi 0, %s28
      %s22 = sphi 0, %s20
      %s23 = sphi 0, %s21
      %s24 = sphi 0, %s22
      %s25 = sphi 0, %s23
      %s37 = sphi 0, %s39
      %s40 = sphi 0, %s37
      %s41 = sphi 0, %s40
      %s57 = sphi 0, %s41
      %s63 = sphi 0, %s65
      %s66 = sphi 0, %s63
      %s67 = sphi 0, %s66
      %s83 = sphi 0, %s67
      %s87 = sphi 0, %s87
      %s89 = sphi 0, %s87
      %s90 = sphi 0, %s89
      %s104 = sphi 0, %s90
      %s108 = sphi 0, %s108
      %s110 = sphi 0, %s108
      %s111 = sphi 0, %s110
      %s125 = sphi 0, %s111
      %s131 = sphi 0, %s133
      %s134 = sphi 0, %s131
      %s135 = sphi 0, %s134
      %s151 = sphi 0, %s135
    $region4: #{tpu_custom_call.1} parent=1 // loop_header_branch
      %16 = sbr.rel (%p14) target = $region8
    $region5: #{tpu_custom_call.1} parent=1 // loop_body
      %s18 = ssub.s32 %s13, 1
      %s19 = ssub.s32 %s13, 2
      %s26 = sadd.s32 1, %s21
      %p27 = scmp.ge.s32.totalorder %s26, 1
      %s28 = scalar_select %p27, 0, %s26
      %s29 = sadd.s32 1, %s20
      %s30 = scalar_select %p27, %s29, %s20
      %p31 = scmp.ge.s32.totalorder %s30, 4
      %s32 = scalar_select %p31, 0, %s30
      %s33 = ssub.s32 %s20, %s32
      %s34 = ssub.s32 %s21, %s28
      %s35 = sor.u32 %s33, %s34
      %p36 = scmp.eq.s32.totalorder %s35, 0
      %s38 = sadd.s32 %s37, 1
      %s39 = scalar_select %p36, %s37, %s38
      %p42 = pneg %p36
      %p43 = scmp.eq.s32.totalorder %s13, 3
      %p44 = por %p42, %p43
      %p45 = scmp.ne.s32.totalorder %s37, %s40
      %p46 = scmp.eq.s32.totalorder %s13, 0
      %p47 = por %p45, %p46
      %p48 = scmp.ne.s32.totalorder %s37, %s40
      %p49 = scmp.eq.s32.totalorder %s18, 3
      %p50 = por %p48, %p49
      %p51 = scmp.ne.s32.totalorder %s40, %s41
      %p52 = scmp.eq.s32.totalorder %s18, 0
      %p53 = por %p51, %p52
      %p54 = scmp.ne.s32.totalorder %s40, %s41
      %p55 = scmp.eq.s32.totalorder %s19, 3
      %p56 = por %p54, %p55
      %p58 = scmp.ne.s32.totalorder %s41, %s57
      %p59 = scmp.eq.s32.totalorder %s19, 0
      %p60 = por %p58, %p59
      %s61 = ssub.s32 %s21, %s28
      %p62 = scmp.eq.s32.totalorder %s61, 0
      %s64 = sadd.s32 %s63, 1
      %s65 = scalar_select %p62, %s63, %s64
      %p68 = pneg %p62
      %p69 = scmp.eq.s32.totalorder %s13, 3
      %p70 = por %p68, %p69
      %p71 = scmp.ne.s32.totalorder %s63, %s66
      %p72 = scmp.eq.s32.totalorder %s13, 0
      %p73 = por %p71, %p72
      %p74 = scmp.ne.s32.totalorder %s63, %s66
      %p75 = scmp.eq.s32.totalorder %s18, 3
      %p76 = por %p74, %p75
      %p77 = scmp.ne.s32.totalorder %s66, %s67
      %p78 = scmp.eq.s32.totalorder %s18, 0
      %p79 = por %p77, %p78
      %p80 = scmp.ne.s32.totalorder %s66, %s67
      %p81 = scmp.eq.s32.totalorder %s19, 3
      %p82 = por %p80, %p81
      %p84 = scmp.ne.s32.totalorder %s67, %s83
      %p85 = scmp.eq.s32.totalorder %s19, 0
      %p86 = por %p84, %p85
      %s88 = sadd.s32 %s87, 1
      %p91 = scmp.eq.s32.totalorder %s13, 3
      %p92 = scmp.ne.s32.totalorder %s87, %s89
      %p93 = scmp.eq.s32.totalorder %s13, 0
      %p94 = por %p92, %p93
      %p95 = scmp.ne.s32.totalorder %s87, %s89
      %p96 = scmp.eq.s32.totalorder %s18, 3
      %p97 = por %p95, %p96
      %p98 = scmp.ne.s32.totalorder %s89, %s90
      %p99 = scmp.eq.s32.totalorder %s18, 0
      %p100 = por %p98, %p99
      %p101 = scmp.ne.s32.totalorder %s89, %s90
      %p102 = scmp.eq.s32.totalorder %s19, 3
      %p103 = por %p101, %p102
      %p105 = scmp.ne.s32.totalorder %s90, %s104
      %p106 = scmp.eq.s32.totalorder %s19, 0
      %p107 = por %p105, %p106
      %s109 = sadd.s32 %s108, 1
      %p112 = scmp.eq.s32.totalorder %s13, 3
      %p113 = scmp.ne.s32.totalorder %s108, %s110
      %p114 = scmp.eq.s32.totalorder %s13, 0
      %p115 = por %p113, %p114
      %p116 = scmp.ne.s32.totalorder %s108, %s110
      %p117 = scmp.eq.s32.totalorder %s18, 3
      %p118 = por %p116, %p117
      %p119 = scmp.ne.s32.totalorder %s110, %s111
      %p120 = scmp.eq.s32.totalorder %s18, 0
      %p121 = por %p119, %p120
      %p122 = scmp.ne.s32.totalorder %s110, %s111
      %p123 = scmp.eq.s32.totalorder %s19, 3
      %p124 = por %p122, %p123
      %p126 = scmp.ne.s32.totalorder %s111, %s125
      %p127 = scmp.eq.s32.totalorder %s19, 0
      %p128 = por %p126, %p127
      %s129 = ssub.s32 %s20, %s32
      %p130 = scmp.eq.s32.totalorder %s129, 0
      %s132 = sadd.s32 %s131, 1
      %s133 = scalar_select %p130, %s131, %s132
      %p136 = pneg %p130
      %p137 = scmp.eq.s32.totalorder %s13, 3
      %p138 = por %p136, %p137
      %p139 = scmp.ne.s32.totalorder %s131, %s134
      %p140 = scmp.eq.s32.totalorder %s13, 0
      %p141 = por %p139, %p140
      %p142 = scmp.ne.s32.totalorder %s131, %s134
      %p143 = scmp.eq.s32.totalorder %s18, 3
      %p144 = por %p142, %p143
      %p145 = scmp.ne.s32.totalorder %s134, %s135
      %p146 = scmp.eq.s32.totalorder %s18, 0
      %p147 = por %p145, %p146
      %p148 = scmp.ne.s32.totalorder %s134, %s135
      %p149 = scmp.eq.s32.totalorder %s19, 3
      %p150 = por %p148, %p149
      %p152 = scmp.ne.s32.totalorder %s135, %s151
      %p153 = scmp.eq.s32.totalorder %s19, 0
      %p154 = por %p152, %p153
      %p155 = scmp.le.s32.totalorder 1, %s13
      %p156 = scmp.lt.s32.totalorder %s13, 5
      %p157 = pnand %p155, %p156
      %p158 = pneg %p157
      // Predicated region
      $region9: #{tpu_custom_call.1} parent=5 // pred_check
        _
      $region10: #{tpu_custom_call.1} parent=5 // pred_check_branch
        %160 = sbr.rel (%p157) target = $region12
      $region11: #{tpu_custom_call.1} parent=5 // pred_region
        %s161 = ssub.s32 %s13, 1
        // Predicated region
        $region13: #{tpu_custom_call.1} parent=11 // pred_check
          %p162 = pneg %p79
        $region14: #{tpu_custom_call.1} parent=11 // pred_check_branch
          %164 = sbr.rel (%p162) target = $region16
        $region15: #{tpu_custom_call.1} parent=11 // pred_region
          %s165 = smul.u32 4, %s23
          %p166 = scmp.lt.s32.totalorder %s165, 3
          %s167 = scalar_select %p166, %s165, 3
          %s168 = smul.addr %s167, 4
          %s169 = scalar_lea.vmem %s1, %s168
          %s170 = smul.u32 4, %s23
        $region16: #{tpu_custom_call.1} parent=11 // pred_fallthru
          _
        // Predicated region
        $region17: #{tpu_custom_call.1} parent=11 // pred_check
          %p171 = pneg %p100
        $region18: #{tpu_custom_call.1} parent=11 // pred_check_branch
          %173 = sbr.rel (%p171) target = $region20
        $region19: #{tpu_custom_call.1} parent=11 // pred_region
          _
        $region20: #{tpu_custom_call.1} parent=11 // pred_fallthru
          _
        // Predicated region
        $region21: #{tpu_custom_call.1} parent=11 // pred_check
          %p174 = pneg %p121
        $region22: #{tpu_custom_call.1} parent=11 // pred_check_branch
          %176 = sbr.rel (%p174) target = $region24
        $region23: #{tpu_custom_call.1} parent=11 // pred_region
          _
        $region24: #{tpu_custom_call.1} parent=11 // pred_fallthru
          _
      $region12: #{tpu_custom_call.1} parent=5 // pred_fallthru
        _
      %p177 = scmp.lt.s32.totalorder %s13, 4
      // Predicated region
      $region25: #{tpu_custom_call.1} parent=5 // pred_check
        %p178 = pneg %p177
      $region26: #{tpu_custom_call.1} parent=5 // pred_check_branch
        %180 = sbr.rel (%p178) target = $region28
      $region27: #{tpu_custom_call.1} parent=5 // pred_region
        // Predicated region
        $region29: #{tpu_custom_call.1} parent=27 // pred_check
          %p181 = pneg %p47
        $region30: #{tpu_custom_call.1} parent=27 // pred_check_branch
          %183 = sbr.rel (%p181) target = $region32
        $region31: #{tpu_custom_call.1} parent=27 // pred_region
          %s184 = smul.u32 16, %s20
          %p185 = scmp.lt.s32.totalorder %s184, 63
          %s186 = scalar_select %p185, %s184, 63
          %p187 = scmp.lt.s32.totalorder %s21, 0
          %s188 = scalar_select %p187, %s21, 0
          %s189 = sadd.s32 %s188, %s186
          %s190 = smul.addr %s189, 4
          %s191 = scalar_lea.vmem %s0, %s190
          %s192 = smul.u32 16, %s20
        $region32: #{tpu_custom_call.1} parent=27 // pred_fallthru
          _
      $region28: #{tpu_custom_call.1} parent=5 // pred_fallthru
        _
      %p193 = scmp.le.s32.totalorder 1, %s13
      %p194 = scmp.lt.s32.totalorder %s13, 5
      %p195 = pnand %p193, %p194
      %p196 = pneg %p195
      // Predicated region
      $region33: #{tpu_custom_call.1} parent=5 // pred_check
        _
      $region34: #{tpu_custom_call.1} parent=5 // pred_check_branch
        %198 = sbr.rel (%p195) target = $region36
      $region35: #{tpu_custom_call.1} parent=5 // pred_region
        %s199 = ssub.s32 %s13, 1
        %s200 = smul.u32 16, %s22
        %p201 = scmp.lt.s32.totalorder %s200, 63
        %s202 = scalar_select %p201, %s200, 63
        %p203 = scmp.lt.s32.totalorder %s23, 0
        %s204 = scalar_select %p203, %s23, 0
        %s205 = sadd.s32 %s204, %s202
        %s206 = smul.addr %s205, 4
        %s207 = scalar_lea.vmem %s0, %s206
        %p208 = pneg %p53
        %p209 = pneg %p50
        %s210 = smul.u32 4, %s23
        %p211 = scmp.lt.s32.totalorder %s210, 3
        %s212 = scalar_select %p211, %s210, 3
        %s213 = smul.addr %s212, 4
        %s214 = scalar_lea.vmem %s1, %s213
        %p215 = pneg %p79
        %p216 = pneg %p76
        %p217 = pneg %p100
        %p218 = pneg %p97
        %p219 = pneg %p121
        %p220 = pneg %p118
        %p221 = pneg %p147
        %p222 = pneg %p144
        %s223 = sand.u32 %s134, 1
        %s224 = scalar_lea.sflag [#allocation3], %s223
        %s225 = sand.u32 %s134, 1
        %s226 = smul.addr %s225, 128
        %s227 = scalar_lea.vmem [#allocation2], %s226
        %s228 = smul.u32 16, %s22
        %p229 = scmp.lt.s32.totalorder %s228, 63
        %s230 = scalar_select %p229, %s228, 63
        %p231 = scmp.lt.s32.totalorder %s23, 0
        %s232 = scalar_select %p231, %s23, 0
        %s233 = sadd.s32 %s232, %s230
        %s234 = smul.addr %s233, 4
        %s235 = scalar_lea.vmem %s0, %s234
        %s236 = smul.u32 16, %s22
        %s237 = smul.u32 4, %s23
        %p238 = scmp.lt.s32.totalorder %s237, 3
        %s239 = scalar_select %p238, %s237, 3
        %s240 = smul.addr %s239, 4
        %s241 = scalar_lea.vmem %s1, %s240
        %s242 = smul.u32 4, %s23
        %s243 = smul.u32 16, %s22
        %v245 = vld [vmem:[%s235] sm:$0xf]
        %v246 = vld [vmem:[%s235 + $0x4] sm:$0xf]
        %v247 = vld [vmem:[%s235 + $0x8] sm:$0xf]
        %v248 = vld [vmem:[%s235 + $0xc] sm:$0xf]
        %v249 = vld [vmem:[%s235 + $0x10] sm:$0xf]
        %v250 = vld [vmem:[%s235 + $0x14] sm:$0xf]
        %v251 = vld [vmem:[%s235 + $0x18] sm:$0xf]
        %v252 = vld [vmem:[%s235 + $0x1c] sm:$0xf]
        %v253 = vld [vmem:[%s235 + $0x20] sm:$0xf]
        %v254 = vld [vmem:[%s235 + $0x24] sm:$0xf]
        %v255 = vld [vmem:[%s235 + $0x28] sm:$0xf]
        %v256 = vld [vmem:[%s235 + $0x2c] sm:$0xf]
        %v257 = vld [vmem:[%s235 + $0x30] sm:$0xf]
        %v258 = vld [vmem:[%s235 + $0x34] sm:$0xf]
        %v259 = vld [vmem:[%s235 + $0x38] sm:$0xf]
        %v260 = vld [vmem:[%s235 + $0x3c] sm:$0xf]
        %v261 = vld [vmem:[%s241] sm:$0xf]
        %v262 = vld [vmem:[%s241 + $0x4] sm:$0xf]
        %v263 = vld [vmem:[%s241 + $0x8] sm:$0xf]
        %v264 = vld [vmem:[%s241 + $0xc] sm:$0xf]
        %v281 = vunpack.c.l.b16 %v245
        %v282 = vunpack.c.l.b16 %v246
        %v283 = vunpack.c.l.b16 %v247
        %v284 = vunpack.c.l.b16 %v248
        %v285 = vunpack.c.l.b16 %v249
        %v286 = vunpack.c.l.b16 %v250
        %v287 = vunpack.c.l.b16 %v251
        %v288 = vunpack.c.l.b16 %v252
        %v289 = vunpack.c.l.b16 %v253
        %v290 = vunpack.c.l.b16 %v254
        %v291 = vunpack.c.l.b16 %v255
        %v292 = vunpack.c.l.b16 %v256
        %v293 = vunpack.c.l.b16 %v257
        %v294 = vunpack.c.l.b16 %v258
        %v295 = vunpack.c.l.b16 %v259
        %v296 = vunpack.c.l.b16 %v260
        %v297 = vpack.c.b16 %v282, %v281
        %v298 = vpack.c.b16 %v284, %v283
        %v299 = vpack.c.b16 %v286, %v285
        %v300 = vpack.c.b16 %v288, %v287
        %v301 = vpack.c.b16 %v290, %v289
        %v302 = vpack.c.b16 %v292, %v291
        %v303 = vpack.c.b16 %v294, %v293
        %v304 = vpack.c.b16 %v296, %v295
        %v309 = vunpack.c.l.b16 %v261
        %v310 = vunpack.c.l.b16 %v262
        %v311 = vunpack.c.l.b16 %v263
        %v312 = vunpack.c.l.b16 %v264
        %v313 = vpack.c.b16 %v310, %v309
        %v314 = vpack.c.b16 %v312, %v311
        %vm317 = vcmask 261120
        %v319 = vsel %vm317, %v297, 0
        %v322 = vsel %vm317, %v298, 0
        %v325 = vsel %vm317, %v299, 0
        %v328 = vsel %vm317, %v300, 0
        %v331 = vsel %vm317, %v301, 0
        %v334 = vsel %vm317, %v302, 0
        %v337 = vsel %vm317, %v303, 0
        %v340 = vsel %vm317, %v304, 0
        %342 = vmatprep.subr.bf16.mxu0 0
        %343 = vmatpush1.bf16.msra.mxu0 0
        %344 = vmatprep.subr.bf16.mxu0 0
        %345 = vmatpush1.bf16.msra.mxu0 0
        %346 = vmatprep.subr.bf16.mxu0 0
        %347 = vmatpush1.bf16.msra.mxu0 0
        %348 = vmatprep.subr.bf16.mxu0 0
        %349 = vmatpush1.bf16.msra.mxu0 0
        %350 = vmatprep.subr.bf16.mxu0 0
        %351 = vmatpush1.bf16.msra.mxu0 0
        %352 = vmatprep.subr.bf16.mxu0 0
        %353 = vmatpush1.bf16.msra.mxu0 0
        %354 = vmatprep.subr.bf16.mxu0 0
        %355 = vmatpush1.bf16.msra.mxu0 %v314
        %356 = vmatprep.subr.bf16.mxu0 0
        %357 = vmatpush1.bf16.msra.mxu0 %v313
        %358 = vmatprep.subr.bf16.mxu0 0
        %359 = vmatpush2.bf16.msra.mxu0 0
        %360 = vmatprep.subr.bf16.mxu0 0
        %361 = vmatpush2.bf16.msra.mxu0 0
        %362 = vmatprep.subr.bf16.mxu0 0
        %363 = vmatpush2.bf16.msra.mxu0 0
        %364 = vmatprep.subr.bf16.mxu0 0
        %365 = vmatpush2.bf16.msra.mxu0 0
        %366 = vmatprep.subr.bf16.mxu0 0
        %367 = vmatpush2.bf16.msra.mxu0 0
        %368 = vmatprep.subr.bf16.mxu0 0
        %369 = vmatpush2.bf16.msra.mxu0 0
        %370 = vmatprep.subr.bf16.mxu0 0
        %371 = vmatpush2.bf16.msra.mxu0 0
        %372 = vmatprep.subr.bf16.mxu0 0
        %373 = vmatpush2.bf16.msra.mxu0 0
        %374 = vmatprep.mubr.bf16.mxu0 0
        %375 = vmatmul.mubr.bf16.gmra.mxu0 %v319
        %v376 = vpop.f32.mrf.mxu0
        %v377 = vadd.f32 0.0, %v376
        %v378 = vpop.f32.mrf.mxu0
        %v379 = vpop.f32.mrf.mxu0
        %v380 = vadd.f32 0.0, %v379
        %v381 = vpop.f32.mrf.mxu0
        %382 = vmatprep.mubr.bf16.mxu0 0
        %383 = vmatmul.mubr.bf16.gmra.mxu0 %v322
        %v384 = vpop.f32.mrf.mxu0
        %v385 = vadd.f32 0.0, %v384
        %v386 = vpop.f32.mrf.mxu0
        %v387 = vpop.f32.mrf.mxu0
        %v388 = vadd.f32 0.0, %v387
        %v389 = vpop.f32.mrf.mxu0
        %390 = vmatprep.mubr.bf16.mxu0 0
        %391 = vmatmul.mubr.bf16.gmra.mxu0 %v325
        %v392 = vpop.f32.mrf.mxu0
        %v393 = vadd.f32 0.0, %v392
        %v394 = vpop.f32.mrf.mxu0
        %v395 = vpop.f32.mrf.mxu0
        %v396 = vadd.f32 0.0, %v395
        %v397 = vpop.f32.mrf.mxu0
        %398 = vmatprep.mubr.bf16.mxu0 0
        %399 = vmatmul.mubr.bf16.gmra.mxu0 %v328
        %v400 = vpop.f32.mrf.mxu0
        %v401 = vadd.f32 0.0, %v400
        %v402 = vpop.f32.mrf.mxu0
        %v403 = vpop.f32.mrf.mxu0
        %v404 = vadd.f32 0.0, %v403
        %v405 = vpop.f32.mrf.mxu0
        %406 = vmatprep.mubr.bf16.mxu0 0
        %407 = vmatmul.mubr.bf16.gmra.mxu0 %v331
        %v408 = vpop.f32.mrf.mxu0
        %v409 = vadd.f32 0.0, %v408
        %v410 = vpop.f32.mrf.mxu0
        %v411 = vpop.f32.mrf.mxu0
        %v412 = vadd.f32 0.0, %v411
        %v413 = vpop.f32.mrf.mxu0
        %414 = vmatprep.mubr.bf16.mxu0 0
        %415 = vmatmul.mubr.bf16.gmra.mxu0 %v334
        %v416 = vpop.f32.mrf.mxu0
        %v417 = vadd.f32 0.0, %v416
        %v418 = vpop.f32.mrf.mxu0
        %v419 = vpop.f32.mrf.mxu0
        %v420 = vadd.f32 0.0, %v419
        %v421 = vpop.f32.mrf.mxu0
        %422 = vmatprep.mubr.bf16.mxu0 0
        %423 = vmatmul.mubr.bf16.gmra.mxu0 %v337
        %v424 = vpop.f32.mrf.mxu0
        %v425 = vadd.f32 0.0, %v424
        %v426 = vpop.f32.mrf.mxu0
        %v427 = vpop.f32.mrf.mxu0
        %v428 = vadd.f32 0.0, %v427
        %v429 = vpop.f32.mrf.mxu0
        %430 = vmatprep.mubr.bf16.mxu0 0
        %431 = vmatmul.mubr.bf16.gmra.mxu0 %v340
        %v432 = vpop.f32.mrf.mxu0
        %v433 = vadd.f32 0.0, %v432
        %v434 = vpop.f32.mrf.mxu0
        %v435 = vpop.f32.mrf.mxu0
        %v436 = vadd.f32 0.0, %v435
        %v437 = vpop.f32.mrf.mxu0
        %438 = vdwg.mxu0
        %v439 = vld [vmem:[%s2] sm:$0x1]
        %v441 = vlaneseq
        %v442 = vshrl.u32 %v441, 7
        %v443 = vsub.s32 0, %v442
        %v444 = vrot.slane %v439, %v443
        %v446 = vmul.f32 %v377, %v444
        %v447 = vmul.f32 %v380, %v444
        %v448 = vmul.f32 %v385, %v444
        %v449 = vmul.f32 %v388, %v444
        %v450 = vmul.f32 %v393, %v444
        %v451 = vmul.f32 %v396, %v444
        %v452 = vmul.f32 %v401, %v444
        %v453 = vmul.f32 %v404, %v444
        %v454 = vmul.f32 %v409, %v444
        %v455 = vmul.f32 %v412, %v444
        %v456 = vmul.f32 %v417, %v444
        %v457 = vmul.f32 %v420, %v444
        %v458 = vmul.f32 %v425, %v444
        %v459 = vmul.f32 %v428, %v444
        %v460 = vmul.f32 %v433, %v444
        %v461 = vmul.f32 %v436, %v444
        %v462 = vld [vmem:[%s3] sm:$0x1]
        %v464 = vlaneseq
        %v465 = vshrl.u32 %v464, 7
        %v466 = vsub.s32 0, %v465
        %v467 = vrot.slane %v462, %v466
        %v469 = vadd.f32 %v446, %v467
        %v470 = vadd.f32 %v447, %v467
        %v471 = vadd.f32 %v448, %v467
        %v472 = vadd.f32 %v449, %v467
        %v473 = vadd.f32 %v450, %v467
        %v474 = vadd.f32 %v451, %v467
        %v475 = vadd.f32 %v452, %v467
        %v476 = vadd.f32 %v453, %v467
        %v477 = vadd.f32 %v454, %v467
        %v478 = vadd.f32 %v455, %v467
        %v479 = vadd.f32 %v456, %v467
        %v480 = vadd.f32 %v457, %v467
        %v481 = vadd.f32 %v458, %v467
        %v482 = vadd.f32 %v459, %v467
        %v483 = vadd.f32 %v460, %v467
        %v484 = vadd.f32 %v461, %v467
        %v485 = vmax.f32 %v469, 0.0
        %v486 = vmax.f32 %v470, 0.0
        %v487 = vmax.f32 %v471, 0.0
        %v488 = vmax.f32 %v472, 0.0
        %v489 = vmax.f32 %v473, 0.0
        %v490 = vmax.f32 %v474, 0.0
        %v491 = vmax.f32 %v475, 0.0
        %v492 = vmax.f32 %v476, 0.0
        %v493 = vmax.f32 %v477, 0.0
        %v494 = vmax.f32 %v478, 0.0
        %v495 = vmax.f32 %v479, 0.0
        %v496 = vmax.f32 %v480, 0.0
        %v497 = vmax.f32 %v481, 0.0
        %v498 = vmax.f32 %v482, 0.0
        %v499 = vmax.f32 %v483, 0.0
        %v500 = vmax.f32 %v484, 0.0
        %501 = vst [vmem:[%s227] sm:$0xff] %v485
        %502 = vst [vmem:[%s227 + $0x8] sm:$0xff] %v486
        %503 = vst [vmem:[%s227 + $0x10] sm:$0xff] %v487
        %504 = vst [vmem:[%s227 + $0x18] sm:$0xff] %v488
        %505 = vst [vmem:[%s227 + $0x20] sm:$0xff] %v489
        %506 = vst [vmem:[%s227 + $0x28] sm:$0xff] %v490
        %507 = vst [vmem:[%s227 + $0x30] sm:$0xff] %v491
        %508 = vst [vmem:[%s227 + $0x38] sm:$0xff] %v492
        %509 = vst [vmem:[%s227 + $0x40] sm:$0xff] %v493
        %510 = vst [vmem:[%s227 + $0x48] sm:$0xff] %v494
        %511 = vst [vmem:[%s227 + $0x50] sm:$0xff] %v495
        %512 = vst [vmem:[%s227 + $0x58] sm:$0xff] %v496
        %513 = vst [vmem:[%s227 + $0x60] sm:$0xff] %v497
        %514 = vst [vmem:[%s227 + $0x68] sm:$0xff] %v498
        %515 = vst [vmem:[%s227 + $0x70] sm:$0xff] %v499
        %516 = vst [vmem:[%s227 + $0x78] sm:$0xff] %v500
        %s517 = sand.u32 %s134, 1
        %s518 = scalar_lea.sflag [#allocation3], %s517
        %s519 = sand.u32 %s134, 1
        %s520 = smul.addr %s519, 128
        %s521 = scalar_lea.vmem [#allocation2], %s520
        // Predicated region
        $region37: #{tpu_custom_call.1} parent=35 // pred_check
          %p522 = pneg %p144
        $region38: #{tpu_custom_call.1} parent=35 // pred_check_branch
          %524 = sbr.rel (%p522) target = $region40
        $region39: #{tpu_custom_call.1} parent=35 // pred_region
          %s525 = smul.u32 16, %s22
          %s527 = ssub.s32 2048, 2048
          %528 = vsyncadd %s518, %s527
          %s529 = smul.addr %s525, 128
          %s530 = scalar_lea.hbm %s4, %s529
          %s531 = sshll.u32 %s521, 4
          %s532 = int_to_ptr.vmem [resolvable:$true] %s531
          %537 = dma.vmem_to_hbm [thread:$0]  %s532, 2048, %s530, %s518, 128, 128, 8
        $region40: #{tpu_custom_call.1} parent=35 // pred_fallthru
          _
      $region36: #{tpu_custom_call.1} parent=5 // pred_fallthru
        _
      %p538 = scmp.le.s32.totalorder 2, %s13
      // Predicated region
      $region41: #{tpu_custom_call.1} parent=5 // pred_check
        %p539 = pneg %p538
      $region42: #{tpu_custom_call.1} parent=5 // pred_check_branch
        %541 = sbr.rel (%p539) target = $region44
      $region43: #{tpu_custom_call.1} parent=5 // pred_region
        %s542 = ssub.s32 %s13, 2
        // Predicated region
        $region45: #{tpu_custom_call.1} parent=43 // pred_check
          %p543 = pneg %p150
        $region46: #{tpu_custom_call.1} parent=43 // pred_check_branch
          %545 = sbr.rel (%p543) target = $region48
        $region47: #{tpu_custom_call.1} parent=43 // pred_region
          %s546 = sand.u32 %s135, 1
          %s547 = scalar_lea.sflag [#allocation3], %s546
          %s548 = sand.u32 %s135, 1
          %s549 = smul.addr %s548, 128
          %s550 = scalar_lea.vmem [#allocation2], %s549
          %551 = dma.done %s547, 2048
        $region48: #{tpu_custom_call.1} parent=43 // pred_fallthru
          _
      $region44: #{tpu_custom_call.1} parent=5 // pred_fallthru
        _
    $region6: #{tpu_custom_call.1} parent=1 // loop_footer
      %s17 = sadd.s32 1, %s13
    $region7: #{tpu_custom_call.1} parent=1 // loop_footer_branch
      %12 = sbr.rel target = $region3
    $region8: #{tpu_custom_call.1} parent=1 // loop_exit
      _
    %552 = vsyncpa [#allocation3], 1
    %s553 = scalar_lea.sflag [#allocation3], 1
    %554 = vsyncpa %s553, 1

</llo_original>
